<compile_context>
chip_gen: v6e
topology: v6e:2x2x1
jax: 0.10.0
libtpu: 0.0.40
codegen_flags: <defaults>
</compile_context>

<pallas_src>
import math
from functools import partial

import jax
import jax.numpy as jnp
from jax.experimental import pallas as pl
from jax.experimental.pallas import tpu as pltpu

_VMEM_LIMIT = 32 * 1024 * 1024  # fits v7x (64 MiB phys) as well as v5e/v6e


# --------------------------- tiled linear (matmul) ---------------------------

def _matmul_kernel(x_ref, w_ref, o_ref, acc_ref):
    @pl.when(pl.program_id(2) == 0)
    def _():
        acc_ref[...] = jnp.zeros_like(acc_ref)

    acc_ref[...] += jnp.dot(x_ref[...], w_ref[...],
                            preferred_element_type=jnp.float32)

    @pl.when(pl.program_id(2) == pl.num_programs(2) - 1)
    def _():
        o_ref[...] = acc_ref[...].astype(o_ref.dtype)


def _pick_tile(dim, target, align):
    """Largest tile <= target that divides dim and is a multiple of `align`,
    or the full dim when dim <= target (full-extent blocks are always legal)."""
    if dim <= target:
        return dim
    t = (target // align) * align
    while t >= align:
        if dim % t == 0:
            return t
        t -= align
    return dim


def pallas_matmul(x2d, w_in_out, *, tm=256, tn=256, tk=512):
    """x2d: (M, K) f32, w_in_out: (K, N) f32 -> (M, N). Tiled, pipelined MXU matmul."""
    M, K = x2d.shape
    K2, N = w_in_out.shape
    assert K == K2
    tm = _pick_tile(M, tm, 8)
    tn = _pick_tile(N, tn, 128)
    tk = _pick_tile(K, tk, 128)
    grid = (M // tm, N // tn, K // tk)
    return pl.pallas_call(
        _matmul_kernel,
        out_shape=jax.ShapeDtypeStruct((M, N), x2d.dtype),
        grid_spec=pltpu.PrefetchScalarGridSpec(
            num_scalar_prefetch=0,
            grid=grid,
            in_specs=[
                pl.BlockSpec((tm, tk), lambda i, j, k: (i, k)),
                pl.BlockSpec((tk, tn), lambda i, j, k: (k, j)),
            ],
            out_specs=pl.BlockSpec((tm, tn), lambda i, j, k: (i, j)),
            scratch_shapes=[pltpu.VMEM((tm, tn), jnp.float32)],
        ),
        compiler_params=pltpu.CompilerParams(
            dimension_semantics=("parallel", "parallel", "arbitrary"),
            vmem_limit_bytes=_VMEM_LIMIT,
        ),
    )(x2d, w_in_out)


# ------------------------ batched multi-head attention ------------------------

def _mha_attention_kernel(vl_ref, q_ref, k_ref, v_ref, ctx_ref, w_ref, *,
                          num_heads, head_dim):
    b = pl.program_id(0)

    # Scale q (Q*Dh multiplies) instead of the (Q, K) scores tensor.
    q = q_ref[0] * jnp.float32(1.0 / math.sqrt(head_dim))   # (NH, Q, Dh)
    k = k_ref[0]                                             # (NH, K, Dh)
    v = v_ref[0]                                             # (NH, K, Dh)

    # All heads of this batch element in one batched contraction (no k.T).
    scores = jnp.einsum("hqd,hkd->hqk", q, k,
                        preferred_element_type=jnp.float32)  # (NH, Q, K)

    valid_len = vl_ref[b]                                    # scalar int32 (SMEM)
    key_ids = jax.lax.broadcasted_iota(jnp.int32, scores.shape, 2)
    # Large finite negative instead of -inf so a fully-masked row cannot NaN.
    scores = jnp.where(key_ids >= valid_len, jnp.float32(-1e30), scores)

    # Numerically-stable masked softmax over keys.
    m = jnp.max(scores, axis=-1, keepdims=True)
    e = jnp.exp(scores - m)
    denom = jnp.sum(e, axis=-1, keepdims=True)
    weights = e * pl.reciprocal(denom, approx=True)          # (NH, Q, K)

    ctx = jnp.einsum("hqk,hkd->hqd", weights, v,
                     preferred_element_type=jnp.float32)     # (NH, Q, Dh)

    # Lane-dense merged output: heads packed along the last dim -> (Q, NH*Dh).
    merged = jnp.concatenate([ctx[h] for h in range(num_heads)], axis=-1)
    ctx_ref[0] = merged.astype(ctx_ref.dtype)
    w_ref[0] = weights.astype(w_ref.dtype)


def pallas_mha_attention(qh, kh, vh, valid_lens):
    """qh/kh/vh: (B, NH, S, Dh) f32; valid_lens: (B,) int32.

    Returns (merged context (B, Q, NH*Dh), weights (B, NH, Q, K))."""
    B, NH, Q, Dh = qh.shape
    K = kh.shape[2]
    H = NH * Dh
    grid_spec = pltpu.PrefetchScalarGridSpec(
        num_scalar_prefetch=1,
        grid=(B,),
        in_specs=[
            pl.BlockSpec((1, NH, Q, Dh), lambda b, vl: (b, 0, 0, 0)),
            pl.BlockSpec((1, NH, K, Dh), lambda b, vl: (b, 0, 0, 0)),
            pl.BlockSpec((1, NH, K, Dh), lambda b, vl: (b, 0, 0, 0)),
        ],
        out_specs=(
            pl.BlockSpec((1, Q, H), lambda b, vl: (b, 0, 0)),
            pl.BlockSpec((1, NH, Q, K), lambda b, vl: (b, 0, 0, 0)),
        ),
    )
    return pl.pallas_call(
        partial(_mha_attention_kernel, num_heads=NH, head_dim=Dh),
        out_shape=(
            jax.ShapeDtypeStruct((B, Q, H), qh.dtype),
            jax.ShapeDtypeStruct((B, NH, Q, K), jnp.float32),
        ),
        grid_spec=grid_spec,
        compiler_params=pltpu.CompilerParams(
            dimension_semantics=("parallel",),   # independent batch elements (v7x 2 TCs)
            vmem_limit_bytes=_VMEM_LIMIT,
        ),
    )(valid_lens.astype(jnp.int32), qh, kh, vh)


# --------------------------- Multi-head attention ---------------------------

def init_mha_params(key, num_hidden_units):
    """nn.Linear(num_hidden_units, num_hidden_units, bias=False) x 4.
    PyTorch weight shape is (out, in); we store the transposed (in, out)."""
    keys = jax.random.split(key, 4)
    bound = 1.0 / math.sqrt(num_hidden_units)

    def w(k):
        return jax.random.uniform(
            k, (num_hidden_units, num_hidden_units),
            minval=-bound, maxval=bound, dtype=jnp.float32)

    return {"W_q": w(keys[0]), "W_k": w(keys[1]),
            "W_v": w(keys[2]), "W_o": w(keys[3])}


def split_heads(x, num_heads):
    # (B, S, H) -> (B, NH, S, Dh)
    B, S, H = x.shape
    return jnp.transpose(x.reshape(B, S, num_heads, H // num_heads), (0, 2, 1, 3))


def multi_head_attention(params, queries, keys, values, valid_lens, num_heads):
    """Matches MultiHeadAttention.forward.

    queries: (B, Q, H), keys/values: (B, K, H), valid_lens: (B,) int32.
    Returns (context (B, Q, H), weights (B*num_heads, Q, K))."""
    B, Q, H = queries.shape
    K = keys.shape[1]

    if queries is keys and keys is values:
        # Self-attention: one fused (H, 3H) projection instead of three matmuls.
        w_qkv = jnp.concatenate(
            [params["W_q"], params["W_k"], params["W_v"]], axis=1)
        qkv = pallas_matmul(queries.reshape(B * Q, H), w_qkv).reshape(B, Q, 3 * H)
        q, k, v = qkv[..., :H], qkv[..., H:2 * H], qkv[..., 2 * H:]
    else:
        def proj(x, w):
            Bx, Sx, _ = x.shape
            return pallas_matmul(x.reshape(Bx * Sx, H), w).reshape(Bx, Sx, H)
        q = proj(queries, params["W_q"])
        k = proj(keys, params["W_k"])
        v = proj(values, params["W_v"])

    qh = split_heads(q, num_heads)
    kh = split_heads(k, num_heads)
    vh = split_heads(v, num_heads)

    # Kernel writes the context already merged (lane-dense), so no merge_heads
    # transpose is needed here.
    context_merged, weights4 = pallas_mha_attention(qh, kh, vh, valid_lens)

    out = pallas_matmul(context_merged.reshape(B * Q, H),
                        params["W_o"]).reshape(B, Q, H)
    weights = weights4.reshape(B * num_heads, Q, K)   # torch layout (B*NH, Q, K)
    return out, weights


# ------------------------------ pure-JAX reference ------------------------------

def reference_mha(params, queries, keys, values, valid_lens, num_heads):
    B, Q, H = queries.shape
    K = keys.shape[1]
    Dh = H // num_heads
    q = queries @ params["W_q"]
    k = keys @ params["W_k"]
    v = values @ params["W_v"]

    def split(x):
        Bx, Sx, _ = x.shape
        return jnp.transpose(
            x.reshape(Bx, Sx, num_heads, Dh), (0, 2, 1, 3)
        ).reshape(Bx * num_heads, Sx, Dh)

    qh, kh, vh = split(q), split(k), split(v)
    vl_h = jnp.repeat(valid_lens.astype(jnp.int32), num_heads, axis=0)
    scores = jnp.einsum("bqd,bkd->bqk", qh, kh) / math.sqrt(Dh)
    key_ids = jnp.arange(K)[None, None, :]
    scores = jnp.where(key_ids >= vl_h[:, None, None], -jnp.inf, scores)
    weights = jax.nn.softmax(scores, axis=-1)
    ctx = jnp.einsum("bqk,bkd->bqd", weights, vh)
    merged = jnp.transpose(
        ctx.reshape(B, num_heads, Q, Dh), (0, 2, 1, 3)).reshape(B, Q, H)
    out = merged @ params["W_o"]
    return out, weights


# ----------------------------------- main -----------------------------------

if __name__ == "__main__":
    B, S, H, NH = 2, 8, 32, 4  # batch, seq, hidden, heads

    key = jax.random.PRNGKey(0)
    k_par, k_x, k_k, k_v = jax.random.split(key, 4)

    params = init_mha_params(k_par, H)
    x = jax.random.normal(k_x, (B, S, H), dtype=jnp.float32)
    keys_in = jax.random.normal(k_k, (B, S, H), dtype=jnp.float32)
    values_in = jax.random.normal(k_v, (B, S, H), dtype=jnp.float32)
    valid_lens = jnp.array([5, 8], dtype=jnp.int32)  # shape (B,)

    # Tolerances account for pl.reciprocal(approx=True) in the softmax normalization.
    ATOL = RTOL = 5e-3

    # ---- self-attention (exercises the fused QKV projection path) ----
    ctx_sa, w_sa = multi_head_attention(params, x, x, x, valid_lens, NH)
    ctx_sa = jax.block_until_ready(ctx_sa)
    w_sa = jax.block_until_ready(w_sa)
    ref_ctx_sa, ref_w_sa = reference_mha(params, x, x, x, valid_lens, NH)
    assert ctx_sa.shape == (B, S, H)
    assert w_sa.shape == (B * NH, S, S)
    assert jnp.allclose(ctx_sa, ref_ctx_sa, atol=ATOL, rtol=RTOL)
    assert jnp.allclose(w_sa, ref_w_sa, atol=ATOL, rtol=RTOL)

    # ---- cross-attention-style call (separate q / k / v projections) ----
    ctx_ca, w_ca = multi_head_attention(params, x, keys_in, values_in,
                                        valid_lens, NH)
    ctx_ca = jax.block_until_ready(ctx_ca)
    w_ca = jax.block_until_ready(w_ca)
    ref_ctx_ca, ref_w_ca = reference_mha(params, x, keys_in, values_in,
                                         valid_lens, NH)
    assert ctx_ca.shape == (B, S, H)
    assert w_ca.shape == (B * NH, S, S)
    assert jnp.allclose(ctx_ca, ref_ctx_ca, atol=ATOL, rtol=RTOL)
    assert jnp.allclose(w_ca, ref_w_ca, atol=ATOL, rtol=RTOL)

    print("KERNEL_OK")
</pallas_src>

<mosaic_0001>
module attributes {stable_mosaic.version = 11 : i64} {
  func.func @_matmul_kernel(%arg0: i32, %arg1: i32, %arg2: i32, %arg3: memref<16x32xf32, #tpu.memory_space<vmem>>, %arg4: memref<32x96xf32, #tpu.memory_space<vmem>>, %arg5: memref<16x96xf32, #tpu.memory_space<vmem>>, %arg6: memref<16x96xf32, #tpu.memory_space<vmem>>) attributes {dimension_semantics = [#tpu.dimension_semantics<parallel>, #tpu.dimension_semantics<parallel>, #tpu.dimension_semantics<arbitrary>], iteration_bounds = array<i64: 1, 1, 1>, scalar_prefetch = 0 : i64, scratch_operands = 1 : i64, tpu.core_type = #tpu.core_type<tc>, window_params = [{transform_indices = @transform_0, window_bounds = array<i64: 16, 32>}, {transform_indices = @transform_1, window_bounds = array<i64: 32, 96>}, {transform_indices = @transform_2, window_bounds = array<i64: 16, 96>}]} {
    %c0_i32 = arith.constant 0 : i32
    %0 = arith.cmpi eq, %arg2, %c0_i32 : i32
    %1 = arith.extui %0 : i1 to i32
    %c0_i32_0 = arith.constant 0 : i32
    %2 = arith.cmpi ne, %1, %c0_i32_0 : i32
    scf.if %2 {
      %cst_10 = arith.constant 0.000000e+00 : f32
      %12 = vector.broadcast %cst_10 : f32 to vector<16x96xf32>
      %c0_11 = arith.constant 0 : index
      %c0_12 = arith.constant 0 : index
      %13 = vector.load %arg6[%c0_11, %c0_12] : memref<16x96xf32, #tpu.memory_space<vmem>>, vector<16x96xf32>
      tpu.vector_store %arg6[%c0_11, %c0_12], %12 {strides = array<i32>} : memref<16x96xf32, #tpu.memory_space<vmem>>, vector<16x96xf32>,
    } else {
    }
    %c0 = arith.constant 0 : index
    %c0_1 = arith.constant 0 : index
    %3 = vector.load %arg6[%c0, %c0_1] : memref<16x96xf32, #tpu.memory_space<vmem>>, vector<16x96xf32>
    %c0_2 = arith.constant 0 : index
    %c0_3 = arith.constant 0 : index
    %4 = vector.load %arg3[%c0_2, %c0_3] : memref<16x32xf32, #tpu.memory_space<vmem>>, vector<16x32xf32>
    %c0_4 = arith.constant 0 : index
    %c0_5 = arith.constant 0 : index
    %5 = vector.load %arg4[%c0_4, %c0_5] : memref<32x96xf32, #tpu.memory_space<vmem>>, vector<32x96xf32>
    %cst = arith.constant dense<0.000000e+00> : vector<16x96xf32>
    %6 = tpu.matmul %4, %5, %cst {dimension_numbers = #tpu.dot_dimension_numbers<[1], [0], [0], [1], [0, 0, 1, 1], [], []>} : vector<16x32xf32>, vector<32x96xf32>, vector<16x96xf32> -> vector<16x96xf32>
    %7 = arith.addf %3, %6 : vector<16x96xf32>
    %c0_6 = arith.constant 0 : index
    %c0_7 = arith.constant 0 : index
    %8 = vector.load %arg6[%c0_6, %c0_7] : memref<16x96xf32, #tpu.memory_space<vmem>>, vector<16x96xf32>
    tpu.vector_store %arg6[%c0_6, %c0_7], %7 {strides = array<i32>} : memref<16x96xf32, #tpu.memory_space<vmem>>, vector<16x96xf32>,
    %c0_i32_8 = arith.constant 0 : i32
    %9 = arith.cmpi eq, %arg2, %c0_i32_8 : i32
    %10 = arith.extui %9 : i1 to i32
    %c0_i32_9 = arith.constant 0 : i32
    %11 = arith.cmpi ne, %10, %c0_i32_9 : i32
    scf.if %11 {
      %c0_10 = arith.constant 0 : index
      %c0_11 = arith.constant 0 : index
      %12 = vector.load %arg6[%c0_10, %c0_11] : memref<16x96xf32, #tpu.memory_space<vmem>>, vector<16x96xf32>
      %c0_12 = arith.constant 0 : index
      %c0_13 = arith.constant 0 : index
      %13 = vector.load %arg5[%c0_12, %c0_13] : memref<16x96xf32, #tpu.memory_space<vmem>>, vector<16x96xf32>
      tpu.vector_store %arg5[%c0_12, %c0_13], %12 {strides = array<i32>} : memref<16x96xf32, #tpu.memory_space<vmem>>, vector<16x96xf32>,
    } else {
    }
    return
  }
  func.func @transform_0(%arg0: i32, %arg1: i32, %arg2: i32) -> (i32, i32) {
    %c0_i32 = arith.constant 0 : i32
    return %arg0, %arg2 : i32, i32
  }
  func.func @transform_1(%arg0: i32, %arg1: i32, %arg2: i32) -> (i32, i32) {
    %c0_i32 = arith.constant 0 : i32
    return %arg2, %arg1 : i32, i32
  }
  func.func @transform_2(%arg0: i32, %arg1: i32, %arg2: i32) -> (i32, i32) {
    %c0_i32 = arith.constant 0 : i32
    return %arg0, %arg1 : i32, i32
  }
}

</mosaic_0001>

<llo_original>
// kernel: tpu_custom_call.1
$region0: #{tpu_custom_call.1}
  #allocation0 [shape = 'u32[]', space=smem, size = 0x4, offset = 0x4, fixed_abs, tag = 'smem constant byte address 0x4 - core index']
  #allocation1 [shape = 'u32[144,128]{1,0:T(1,128)}', space=vmem, size = 0x12000, scoped, tag = 'internal scratch']
  #allocation2 [shape = 'f32[16,96]{1,0:T(8,128)}', space=vmem, size = 0x2000, scoped, tag = 'scratch operand']
  %s0 = inlined_call_operand.hbm [shape: f32[16,32], index: 0, kind: input, shape index: {}]
  %s1 = inlined_call_operand.hbm [shape: f32[32,96], index: 1, kind: input, shape index: {}]
  %s2 = inlined_call_operand.hbm [shape: f32[16,96], index: 2, kind: output, shape index: {}]
  %s3 = sld [smem:[#allocation0]]
  $region34: #{tpu_custom_call.1} parent=0
    _
  %s5 = ssub.s32 1, %s3
  %s6 = scalar_select 0, %s5, %s3
  $region1: #{tpu_custom_call.1} parent=0
    #allocation3 [shape = 'u8[8192]{0}', space=vmem, size = 0x2000, scoped, tag = 'input window, operand 0, single buffered']
    #allocation4 [shape = 's32[1]{0}', space=sflag, size = 0x4, scoped, tag = 'scoped memory for tpu_custom_call.1']
    #allocation5 [shape = 's32[1]{0}', space=sflag, size = 0x4, scoped, tag = 'scoped memory for tpu_custom_call.1']
    #allocation6 [shape = 'u8[16384]{0}', space=vmem, size = 0x4000, scoped, tag = 'input window, operand 1, single buffered']
    #allocation7 [shape = 's32[1]{0}', space=sflag, size = 0x4, scoped, tag = 'scoped memory for tpu_custom_call.1']
    #allocation8 [shape = 'u8[8192]{0}', space=vmem, size = 0x2000, scoped, tag = 'output window, operand 0, single buffered']
    %7 = vsyncpa [#allocation4], 0
    %8 = vsyncpa [#allocation7], 0
    %9 = vsyncpa [#allocation5], 0
    // Predicated region
    $region2: #{tpu_custom_call.1} parent=1 // pred_check
      _
    $region3: #{tpu_custom_call.1} parent=1 // pred_check_branch
      %11 = sbr.rel (0) target = $region5
    $region4: #{tpu_custom_call.1} parent=1 // pred_region
      %s13 = ssub.s32 256, 256
      %14 = vsyncadd [#allocation4], %s13
      %s15 = sshll.u32 [#allocation3], 4
      %s16 = int_to_ptr.vmem [resolvable:$true] %s15
      %21 = dma.hbm_to_vmem [thread:$0]  %s0, 256, %s16, [#allocation4], 128, 128, 8
    $region5: #{tpu_custom_call.1} parent=1 // pred_fallthru
      _
    // Predicated region
    $region6: #{tpu_custom_call.1} parent=1 // pred_check
      _
    $region7: #{tpu_custom_call.1} parent=1 // pred_check_branch
      %23 = sbr.rel (0) target = $region9
    $region8: #{tpu_custom_call.1} parent=1 // pred_region
      %s25 = ssub.s32 512, 512
      %26 = vsyncadd [#allocation7], %s25
      %s27 = sshll.u32 [#allocation6], 4
      %s28 = int_to_ptr.vmem [resolvable:$true] %s27
      %33 = dma.hbm_to_vmem [thread:$0]  %s1, 512, %s28, [#allocation7], 128, 128, 8
    $region9: #{tpu_custom_call.1} parent=1 // pred_fallthru
      _
    // Predicated region
    $region10: #{tpu_custom_call.1} parent=1 // pred_check
      _
    $region11: #{tpu_custom_call.1} parent=1 // pred_check_branch
      %35 = sbr.rel (0) target = $region13
    $region12: #{tpu_custom_call.1} parent=1 // pred_region
      %36 = dma.done [#allocation4], 256
    $region13: #{tpu_custom_call.1} parent=1 // pred_fallthru
      _
    // Predicated region
    $region14: #{tpu_custom_call.1} parent=1 // pred_check
      _
    $region15: #{tpu_custom_call.1} parent=1 // pred_check_branch
      %38 = sbr.rel (0) target = $region17
    $region16: #{tpu_custom_call.1} parent=1 // pred_region
      %39 = dma.done [#allocation7], 512
    $region17: #{tpu_custom_call.1} parent=1 // pred_fallthru
      _
    %p40 = scmp.eq.s32.totalorder 0, 0
    // Predicated region
    $region18: #{tpu_custom_call.1} parent=1 // pred_check
      %p41 = pneg %p40
    $region19: #{tpu_custom_call.1} parent=1 // pred_check_branch
      %43 = sbr.rel (%p41) target = $region21
    $region20: #{tpu_custom_call.1} parent=1 // pred_region
      %vm44 = vcmask 785408
      %45 = vst.msk [vmem:[#allocation2] sm:$0xff] %vm44, 0.0
      %46 = vst.msk [vmem:[#allocation2 + $0x8] sm:$0xff] %vm44, 0.0
    $region21: #{tpu_custom_call.1} parent=1 // pred_fallthru
      _
    %v47 = vld [vmem:[#allocation2] sm:$0xff]
    %v48 = vld [vmem:[#allocation2 + $0x8] sm:$0xff]
    %v49 = vld [vmem:[#allocation3] sm:$0xff]
    %v50 = vld [vmem:[#allocation3 + $0x8] sm:$0xff]
    %v51 = vld [vmem:[#allocation6] sm:$0xff]
    %v52 = vld [vmem:[#allocation6 + $0x8] sm:$0xff]
    %v53 = vld [vmem:[#allocation6 + $0x10] sm:$0xff]
    %v54 = vld [vmem:[#allocation6 + $0x18] sm:$0xff]
    %vm55 = vcmask 261120
    %v57 = vsel %vm55, %v49, 0
    %v60 = vsel %vm55, %v50, 0
    %62 = vmatprep.subr.mxu0 0.0
    %63 = vmatpush1.msra.mxu0 0.0
    %64 = vmatprep.subr.mxu0 0.0
    %65 = vmatpush1.msra.mxu0 0.0
    %66 = vmatprep.subr.mxu0 0.0
    %67 = vmatpush1.msra.mxu0 0.0
    %68 = vmatprep.subr.mxu0 0.0
    %69 = vmatpush1.msra.mxu0 0.0
    %70 = vmatprep.subr.mxu0 0.0
    %71 = vmatpush1.msra.mxu0 0.0
    %72 = vmatprep.subr.mxu0 0.0
    %73 = vmatpush1.msra.mxu0 0.0
    %74 = vmatprep.subr.mxu0 0.0
    %75 = vmatpush1.msra.mxu0 0.0
    %76 = vmatprep.subr.mxu0 0.0
    %77 = vmatpush1.msra.mxu0 0.0
    %78 = vmatprep.subr.mxu0 0.0
    %79 = vmatpush1.msra.mxu0 0.0
    %80 = vmatprep.subr.mxu0 0.0
    %81 = vmatpush1.msra.mxu0 0.0
    %82 = vmatprep.subr.mxu0 0.0
    %83 = vmatpush1.msra.mxu0 0.0
    %84 = vmatprep.subr.mxu0 0.0
    %85 = vmatpush1.msra.mxu0 0.0
    %86 = vmatprep.subr.mxu0 0.0
    %87 = vmatpush1.msra.mxu0 %v54
    %88 = vmatprep.subr.mxu0 0.0
    %89 = vmatpush1.msra.mxu0 %v53
    %90 = vmatprep.subr.mxu0 0.0
    %91 = vmatpush1.msra.mxu0 %v52
    %92 = vmatprep.subr.mxu0 0.0
    %93 = vmatpush1.msra.mxu0 %v51
    %94 = vmatprep.subr.mxu0 0.0
    %95 = vmatpush2.msra.mxu0 0.0
    %96 = vmatprep.subr.mxu0 0.0
    %97 = vmatpush2.msra.mxu0 0.0
    %98 = vmatprep.subr.mxu0 0.0
    %99 = vmatpush2.msra.mxu0 0.0
    %100 = vmatprep.subr.mxu0 0.0
    %101 = vmatpush2.msra.mxu0 0.0
    %102 = vmatprep.subr.mxu0 0.0
    %103 = vmatpush2.msra.mxu0 0.0
    %104 = vmatprep.subr.mxu0 0.0
    %105 = vmatpush2.msra.mxu0 0.0
    %106 = vmatprep.subr.mxu0 0.0
    %107 = vmatpush2.msra.mxu0 0.0
    %108 = vmatprep.subr.mxu0 0.0
    %109 = vmatpush2.msra.mxu0 0.0
    %110 = vmatprep.subr.mxu0 0.0
    %111 = vmatpush2.msra.mxu0 0.0
    %112 = vmatprep.subr.mxu0 0.0
    %113 = vmatpush2.msra.mxu0 0.0
    %114 = vmatprep.subr.mxu0 0.0
    %115 = vmatpush2.msra.mxu0 0.0
    %116 = vmatprep.subr.mxu0 0.0
    %117 = vmatpush2.msra.mxu0 0.0
    %118 = vmatprep.subr.mxu0 0.0
    %119 = vmatpush2.msra.mxu0 0.0
    %120 = vmatprep.subr.mxu0 0.0
    %121 = vmatpush2.msra.mxu0 0.0
    %122 = vmatprep.subr.mxu0 0.0
    %123 = vmatpush2.msra.mxu0 0.0
    %124 = vmatprep.subr.mxu0 0.0
    %125 = vmatpush2.msra.mxu0 0.0
    %126 = vmatprep.mubr.f32.mxu0 0.0
    %127 = vmatmul.mubr.f32.gmra.mxu0 %v57
    %v128 = vpop.f32.mrf.mxu0
    %v129 = vadd.f32 0.0, %v128
    %v130 = vpop.f32.mrf.mxu0
    %131 = vmatprep.mubr.f32.mxu0 0.0
    %132 = vmatmul.mubr.f32.gmra.mxu0 %v60
    %v133 = vpop.f32.mrf.mxu0
    %v134 = vadd.f32 0.0, %v133
    %v135 = vpop.f32.mrf.mxu0
    %136 = vdwg.mxu0
    %v137 = vadd.f32 %v47, %v129
    %v138 = vadd.f32 %v48, %v134
    %vm139 = vcmask 785408
    %140 = vst.msk [vmem:[#allocation2] sm:$0xff] %vm139, %v137
    %141 = vst.msk [vmem:[#allocation2 + $0x8] sm:$0xff] %vm139, %v138
    // Predicated region
    $region22: #{tpu_custom_call.1} parent=1 // pred_check
      %p142 = pneg %p40
    $region23: #{tpu_custom_call.1} parent=1 // pred_check_branch
      %144 = sbr.rel (%p142) target = $region25
    $region24: #{tpu_custom_call.1} parent=1 // pred_region
      %v145 = vld [vmem:[#allocation2] sm:$0xff]
      %v146 = vld [vmem:[#allocation2 + $0x8] sm:$0xff]
      %147 = vst.msk [vmem:[#allocation8] sm:$0xff] %vm139, %v145
      %148 = vst.msk [vmem:[#allocation8 + $0x8] sm:$0xff] %vm139, %v146
    $region25: #{tpu_custom_call.1} parent=1 // pred_fallthru
      _
    // Predicated region
    $region26: #{tpu_custom_call.1} parent=1 // pred_check
      _
    $region27: #{tpu_custom_call.1} parent=1 // pred_check_branch
      %150 = sbr.rel (0) target = $region29
    $region28: #{tpu_custom_call.1} parent=1 // pred_region
      %s152 = ssub.s32 256, 256
      %153 = vsyncadd [#allocation5], %s152
      %s154 = sshll.u32 [#allocation8], 4
      %s155 = int_to_ptr.vmem [resolvable:$true] %s154
      %160 = dma.vmem_to_hbm [thread:$0]  %s155, 256, %s2, [#allocation5], 128, 128, 8
    $region29: #{tpu_custom_call.1} parent=1 // pred_fallthru
      _
    // Predicated region
    $region30: #{tpu_custom_call.1} parent=1 // pred_check
      _
    $region31: #{tpu_custom_call.1} parent=1 // pred_check_branch
      %162 = sbr.rel (0) target = $region33
    $region32: #{tpu_custom_call.1} parent=1 // pred_region
      %163 = dma.done [#allocation5], 256
    $region33: #{tpu_custom_call.1} parent=1 // pred_fallthru
      _
    %164 = vsyncpa [#allocation4], 1
    %165 = vsyncpa [#allocation7], 1
    %166 = vsyncpa [#allocation5], 1

</llo_original>
